<compile_context>
chip_gen: v6e
topology: v6e:2x2x1
jax: 0.10.0
libtpu: 0.0.40
codegen_flags: <defaults>
</compile_context>

<pallas_src>
import numpy as np
import jax
import jax.numpy as jnp
from jax.experimental import pallas as pl
from jax.experimental.pallas import tpu as pltpu


def _pool_matrix(in_size: int, out_size: int) -> jnp.ndarray:
    """Averaging matrix P (out_size, in_size) matching torch adaptive avg pool."""
    P = np.zeros((out_size, in_size), dtype=np.float32)
    for i in range(out_size):
        start = (i * in_size) // out_size
        end = -(-((i + 1) * in_size) // out_size)  # ceil
        P[i, start:end] = 1.0 / (end - start)
    return jnp.asarray(P)


def _masked_pool_kernel(x_ref, q_ref, inv_ref, o_ref):
    # x_ref:   (1, TC, H*W)    channel-block of flattened feature maps
    # q_ref:   (1, H*W, oh*ow) per-batch mask-folded combined pooling matrix
    # inv_ref: (1, 1, oh*ow)   per-batch 1/(pooled_mask + 1e-8), repeated over ow
    # o_ref:   (1, TC, oh*ow)
    x = x_ref[0]                                   # (TC, HW), native dtype
    q = q_ref[0]                                   # (HW, OHW)
    slab = jnp.dot(x, q, preferred_element_type=jnp.float32)   # (TC, OHW) on MXU
    o_ref[0] = (slab * inv_ref[0]).astype(o_ref.dtype)         # divide as bcast mul


def masked_adaptive_avg_pool(x, mask, output_size, *, block_c=None):
    """x: (B, C, H, W); mask: (B, 1, H, 1); output_size: (oh, ow).

    Returns (pooled_x (B, C, oh, ow), pooled_mask (B, 1, oh, 1)).
    """
    B, C, H, W = x.shape
    oh, ow = output_size
    HW, OHW = H * W, oh * ow

    ph = _pool_matrix(H, oh)                       # (oh, H)
    pw = _pool_matrix(W, ow)                       # (ow, W)

    # --- tiny per-batch prep (wrapper-side JAX; O(B * oh * ow * H * W) floats) ---
    mrow = mask[:, 0, :, 0].astype(jnp.float32)    # (B, H)
    phm = ph[None, :, :] * mrow[:, None, :]        # (B, oh, H): mask folded into P_h
    # Q[b, h*W + w, o*ow + w'] = phm[b, o, h] * pw[w', w]
    q = (phm[:, :, None, :, None] * pw[None, None, :, None, :]).reshape(B, OHW, HW)
    qk = jnp.swapaxes(q, 1, 2).astype(x.dtype)     # (B, HW, OHW)

    pm = jnp.einsum('oh,bh->bo', ph, mrow)         # (B, oh) = AdaptiveAvgPool1d(mask)
    inv = 1.0 / (pm + 1e-8)
    inv_rep = jnp.repeat(inv, ow, axis=-1).reshape(B, 1, OHW).astype(jnp.float32)

    x_flat = x.reshape(B, C, HW)                   # contiguous collapse: free

    # --- channel-block size: big tiles, (8,128)-rule safe, VMEM-friendly -------
    if block_c is None:
        itemsize = jnp.dtype(x.dtype).itemsize
        cap = max(8, ((4 << 20) // max(1, HW * itemsize)) // 8 * 8)  # ~4 MiB/tile
        block_c = C if C <= cap else cap           # either full C or multiple of 8
    grid = (B, pl.cdiv(C, block_c))

    out_flat = pl.pallas_call(
        _masked_pool_kernel,
        out_shape=jax.ShapeDtypeStruct((B, C, OHW), x.dtype),
        grid=grid,
        in_specs=[
            pl.BlockSpec((1, block_c, HW), lambda b, c: (b, c, 0)),
            pl.BlockSpec((1, HW, OHW), lambda b, c: (b, 0, 0)),
            pl.BlockSpec((1, 1, OHW), lambda b, c: (b, 0, 0)),
        ],
        out_specs=pl.BlockSpec((1, block_c, OHW), lambda b, c: (b, c, 0)),
        compiler_params=pltpu.CompilerParams(
            dimension_semantics=("parallel", "parallel")
        ),
    )(x_flat, qk, inv_rep)

    pooled_x = out_flat.reshape(B, C, oh, ow)      # free reshape
    pooled_mask = pm.astype(mask.dtype).reshape(B, 1, oh, 1)
    return pooled_x, pooled_mask


if __name__ == "__main__":
    key = jax.random.PRNGKey(0)
    kx, km = jax.random.split(key)

    B, C, H, W = 2, 4, 16, 16
    output_size = (4, 4)

    x = jax.random.normal(kx, (B, C, H, W), dtype=jnp.float32)
    # binary-ish mask, shape (B, 1, H, 1) as used by the module
    mask = (jax.random.uniform(km, (B, 1, H, 1)) > 0.3).astype(jnp.float32)

    pooled_x, pooled_mask = masked_adaptive_avg_pool(x, mask, output_size)
    pooled_x = jax.block_until_ready(pooled_x)
    pooled_mask = jax.block_until_ready(pooled_mask)

    # Pure-JAX reference (H, W divisible by output_size -> reshape-mean pooling).
    oh, ow = output_size
    xm = x * mask
    ref_x = xm.reshape(B, C, oh, H // oh, ow, W // ow).mean(axis=(3, 5))
    ref_m = mask[:, :, :, 0].reshape(B, 1, oh, H // oh).mean(axis=3)[..., None]
    ref_out = ref_x / (ref_m + 1e-8)

    assert pooled_x.shape == (B, C, oh, ow)
    assert pooled_mask.shape == (B, 1, oh, 1)
    np.testing.assert_allclose(np.asarray(pooled_x), np.asarray(ref_out),
                               rtol=1e-4, atol=1e-5)
    np.testing.assert_allclose(np.asarray(pooled_mask), np.asarray(ref_m),
                               rtol=1e-4, atol=1e-6)
    print("KERNEL_OK")
</pallas_src>

<mosaic_0001>
module attributes {stable_mosaic.version = 11 : i64} {
  func.func @_masked_pool_kernel(%arg0: i32, %arg1: i32, %arg2: memref<1x4x256xf32, #tpu.memory_space<vmem>>, %arg3: memref<1x256x16xf32, #tpu.memory_space<vmem>>, %arg4: memref<1x1x16xf32, #tpu.memory_space<vmem>>, %arg5: memref<1x4x16xf32, #tpu.memory_space<vmem>>) attributes {dimension_semantics = [#tpu.dimension_semantics<parallel>, #tpu.dimension_semantics<parallel>], iteration_bounds = array<i64: 2, 1>, scalar_prefetch = 0 : i64, scratch_operands = 0 : i64, tpu.core_type = #tpu.core_type<tc>, window_params = [{transform_indices = @transform_0, window_bounds = array<i64: 1, 4, 256>}, {transform_indices = @transform_1, window_bounds = array<i64: 1, 256, 16>}, {transform_indices = @transform_2, window_bounds = array<i64: 1, 1, 16>}, {transform_indices = @transform_3, window_bounds = array<i64: 1, 4, 16>}]} {
    %c0 = arith.constant 0 : index
    %c0_0 = arith.constant 0 : index
    %c0_1 = arith.constant 0 : index
    %0 = vector.load %arg2[%c0, %c0_0, %c0_1] : memref<1x4x256xf32, #tpu.memory_space<vmem>>, vector<1x4x256xf32>
    %1 = vector.shape_cast %0 : vector<1x4x256xf32> to vector<4x256xf32>
    %c0_2 = arith.constant 0 : index
    %c0_3 = arith.constant 0 : index
    %c0_4 = arith.constant 0 : index
    %2 = vector.load %arg3[%c0_2, %c0_3, %c0_4] : memref<1x256x16xf32, #tpu.memory_space<vmem>>, vector<1x256x16xf32>
    %3 = vector.shape_cast %2 : vector<1x256x16xf32> to vector<256x16xf32>
    %cst = arith.constant dense<0.000000e+00> : vector<4x16xf32>
    %4 = tpu.matmul %1, %3, %cst {dimension_numbers = #tpu.dot_dimension_numbers<[1], [0], [0], [1], [0, 0, 1, 1], [], []>} : vector<4x256xf32>, vector<256x16xf32>, vector<4x16xf32> -> vector<4x16xf32>
    %c0_5 = arith.constant 0 : index
    %c0_6 = arith.constant 0 : index
    %c0_7 = arith.constant 0 : index
    %5 = vector.load %arg4[%c0_5, %c0_6, %c0_7] : memref<1x1x16xf32, #tpu.memory_space<vmem>>, vector<1x1x16xf32>
    %6 = vector.shape_cast %5 : vector<1x1x16xf32> to vector<1x16xf32>
    %7 = vector.broadcast %6 : vector<1x16xf32> to vector<4x16xf32>
    %8 = arith.mulf %4, %7 : vector<4x16xf32>
    %c0_8 = arith.constant 0 : index
    %c0_9 = arith.constant 0 : index
    %c0_10 = arith.constant 0 : index
    %9 = vector.load %arg5[%c0_8, %c0_9, %c0_10] : memref<1x4x16xf32, #tpu.memory_space<vmem>>, vector<1x4x16xf32>
    %10 = vector.shape_cast %9 : vector<1x4x16xf32> to vector<4x16xf32>
    %11 = vector.shape_cast %8 : vector<4x16xf32> to vector<1x4x16xf32>
    tpu.vector_store %arg5[%c0_8, %c0_9, %c0_10], %11 {strides = array<i32>} : memref<1x4x16xf32, #tpu.memory_space<vmem>>, vector<1x4x16xf32>,
    return
  }
  func.func @transform_0(%arg0: i32, %arg1: i32) -> (i32, i32, i32) {
    %c0_i32 = arith.constant 0 : i32
    %c0_i32_0 = arith.constant 0 : i32
    return %arg0, %arg1, %c0_i32 : i32, i32, i32
  }
  func.func @transform_1(%arg0: i32, %arg1: i32) -> (i32, i32, i32) {
    %c0_i32 = arith.constant 0 : i32
    %c0_i32_0 = arith.constant 0 : i32
    %c0_i32_1 = arith.constant 0 : i32
    return %arg0, %c0_i32, %c0_i32_0 : i32, i32, i32
  }
  func.func @transform_2(%arg0: i32, %arg1: i32) -> (i32, i32, i32) {
    %c0_i32 = arith.constant 0 : i32
    %c0_i32_0 = arith.constant 0 : i32
    %c0_i32_1 = arith.constant 0 : i32
    return %arg0, %c0_i32, %c0_i32_0 : i32, i32, i32
  }
  func.func @transform_3(%arg0: i32, %arg1: i32) -> (i32, i32, i32) {
    %c0_i32 = arith.constant 0 : i32
    %c0_i32_0 = arith.constant 0 : i32
    return %arg0, %arg1, %c0_i32 : i32, i32, i32
  }
}

</mosaic_0001>

<llo_original>
// kernel: tpu_custom_call.1
$region0: #{tpu_custom_call.1}
  #allocation0 [shape = 'u32[]', space=smem, size = 0x4, offset = 0x4, fixed_abs, tag = 'smem constant byte address 0x4 - core index']
  #allocation1 [shape = 'u32[144,128]{1,0:T(1,128)}', space=vmem, size = 0x12000, scoped, tag = 'internal scratch']
  %s0 = inlined_call_operand.vmem [shape: f32[2,4,256], index: 0, kind: input, shape index: {}]
  %s1 = inlined_call_operand.vmem [shape: f32[2,256,16], index: 1, kind: input, shape index: {}]
  %s2 = inlined_call_operand.vmem [shape: f32[2,1,16], index: 2, kind: input, shape index: {}]
  %s3 = inlined_call_operand.hbm [shape: f32[2,4,16], index: 3, kind: output, shape index: {}]
  %s4 = sld [smem:[#allocation0]]
  $region45: #{tpu_custom_call.1} parent=0
    _
  %s6 = ssub.s32 1, %s4
  %s7 = scalar_select 0, %s6, %s4
  $region1: #{tpu_custom_call.1} parent=0
    #allocation2 [shape = 'u8[4096]{0}', space=vmem, size = 0x1000, scoped, tag = 'output window, operand 0']
    #allocation3 [shape = 's32[2]{0}', space=sflag, size = 0x8, scoped, tag = 'scoped memory for tpu_custom_call.1']
    %8 = vsyncpa [#allocation3], 0
    %s9 = scalar_lea.sflag [#allocation3], 1
    %10 = vsyncpa %s9, 0
    loop: start=0, step=1, limit=4
    $region2: #{tpu_custom_call.1} parent=1 // loop_pre_header
      _
    $region3: #{tpu_custom_call.1} parent=1 // loop_header
      %s12 = sphi 0, %s16
      %p13 = scmp.ge.s32.totalorder %s12, 4
      %s19 = sphi 0, %s31
      %s20 = sphi 0, %s27
      %s21 = sphi 0, %s19
      %s22 = sphi 0, %s20
      %s23 = sphi 0, %s21
      %s24 = sphi 0, %s22
      %s36 = sphi 0, %s38
      %s39 = sphi 0, %s36
      %s40 = sphi 0, %s39
      %s56 = sphi 0, %s40
      %s62 = sphi 0, %s64
      %s65 = sphi 0, %s62
      %s66 = sphi 0, %s65
      %s82 = sphi 0, %s66
      %s88 = sphi 0, %s90
      %s91 = sphi 0, %s88
      %s92 = sphi 0, %s91
      %s108 = sphi 0, %s92
      %s116 = sphi 0, %s118
      %s119 = sphi 0, %s116
      %s120 = sphi 0, %s119
      %s136 = sphi 0, %s120
    $region4: #{tpu_custom_call.1} parent=1 // loop_header_branch
      %15 = sbr.rel (%p13) target = $region8
    $region5: #{tpu_custom_call.1} parent=1 // loop_body
      %s17 = ssub.s32 %s12, 1
      %s18 = ssub.s32 %s12, 2
      %s25 = sadd.s32 1, %s20
      %p26 = scmp.ge.s32.totalorder %s25, 1
      %s27 = scalar_select %p26, 0, %s25
      %s28 = sadd.s32 1, %s19
      %s29 = scalar_select %p26, %s28, %s19
      %p30 = scmp.ge.s32.totalorder %s29, 2
      %s31 = scalar_select %p30, 0, %s29
      %s32 = ssub.s32 %s19, %s31
      %s33 = ssub.s32 %s20, %s27
      %s34 = sor.u32 %s32, %s33
      %p35 = scmp.eq.s32.totalorder %s34, 0
      %s37 = sadd.s32 %s36, 1
      %s38 = scalar_select %p35, %s36, %s37
      %p41 = pneg %p35
      %p42 = scmp.eq.s32.totalorder %s12, 1
      %p43 = por %p41, %p42
      %p44 = scmp.ne.s32.totalorder %s36, %s39
      %p45 = scmp.eq.s32.totalorder %s12, 0
      %p46 = por %p44, %p45
      %p47 = scmp.ne.s32.totalorder %s36, %s39
      %p48 = scmp.eq.s32.totalorder %s17, 1
      %p49 = por %p47, %p48
      %p50 = scmp.ne.s32.totalorder %s39, %s40
      %p51 = scmp.eq.s32.totalorder %s17, 0
      %p52 = por %p50, %p51
      %p53 = scmp.ne.s32.totalorder %s39, %s40
      %p54 = scmp.eq.s32.totalorder %s18, 1
      %p55 = por %p53, %p54
      %p57 = scmp.ne.s32.totalorder %s40, %s56
      %p58 = scmp.eq.s32.totalorder %s18, 0
      %p59 = por %p57, %p58
      %s60 = ssub.s32 %s19, %s31
      %p61 = scmp.eq.s32.totalorder %s60, 0
      %s63 = sadd.s32 %s62, 1
      %s64 = scalar_select %p61, %s62, %s63
      %p67 = pneg %p61
      %p68 = scmp.eq.s32.totalorder %s12, 1
      %p69 = por %p67, %p68
      %p70 = scmp.ne.s32.totalorder %s62, %s65
      %p71 = scmp.eq.s32.totalorder %s12, 0
      %p72 = por %p70, %p71
      %p73 = scmp.ne.s32.totalorder %s62, %s65
      %p74 = scmp.eq.s32.totalorder %s17, 1
      %p75 = por %p73, %p74
      %p76 = scmp.ne.s32.totalorder %s65, %s66
      %p77 = scmp.eq.s32.totalorder %s17, 0
      %p78 = por %p76, %p77
      %p79 = scmp.ne.s32.totalorder %s65, %s66
      %p80 = scmp.eq.s32.totalorder %s18, 1
      %p81 = por %p79, %p80
      %p83 = scmp.ne.s32.totalorder %s66, %s82
      %p84 = scmp.eq.s32.totalorder %s18, 0
      %p85 = por %p83, %p84
      %s86 = ssub.s32 %s19, %s31
      %p87 = scmp.eq.s32.totalorder %s86, 0
      %s89 = sadd.s32 %s88, 1
      %s90 = scalar_select %p87, %s88, %s89
      %p93 = pneg %p87
      %p94 = scmp.eq.s32.totalorder %s12, 1
      %p95 = por %p93, %p94
      %p96 = scmp.ne.s32.totalorder %s88, %s91
      %p97 = scmp.eq.s32.totalorder %s12, 0
      %p98 = por %p96, %p97
      %p99 = scmp.ne.s32.totalorder %s88, %s91
      %p100 = scmp.eq.s32.totalorder %s17, 1
      %p101 = por %p99, %p100
      %p102 = scmp.ne.s32.totalorder %s91, %s92
      %p103 = scmp.eq.s32.totalorder %s17, 0
      %p104 = por %p102, %p103
      %p105 = scmp.ne.s32.totalorder %s91, %s92
      %p106 = scmp.eq.s32.totalorder %s18, 1
      %p107 = por %p105, %p106
      %p109 = scmp.ne.s32.totalorder %s92, %s108
      %p110 = scmp.eq.s32.totalorder %s18, 0
      %p111 = por %p109, %p110
      %s112 = ssub.s32 %s19, %s31
      %s113 = ssub.s32 %s20, %s27
      %s114 = sor.u32 %s112, %s113
      %p115 = scmp.eq.s32.totalorder %s114, 0
      %s117 = sadd.s32 %s116, 1
      %s118 = scalar_select %p115, %s116, %s117
      %p121 = pneg %p115
      %p122 = scmp.eq.s32.totalorder %s12, 1
      %p123 = por %p121, %p122
      %p124 = scmp.ne.s32.totalorder %s116, %s119
      %p125 = scmp.eq.s32.totalorder %s12, 0
      %p126 = por %p124, %p125
      %p127 = scmp.ne.s32.totalorder %s116, %s119
      %p128 = scmp.eq.s32.totalorder %s17, 1
      %p129 = por %p127, %p128
      %p130 = scmp.ne.s32.totalorder %s119, %s120
      %p131 = scmp.eq.s32.totalorder %s17, 0
      %p132 = por %p130, %p131
      %p133 = scmp.ne.s32.totalorder %s119, %s120
      %p134 = scmp.eq.s32.totalorder %s18, 1
      %p135 = por %p133, %p134
      %p137 = scmp.ne.s32.totalorder %s120, %s136
      %p138 = scmp.eq.s32.totalorder %s18, 0
      %p139 = por %p137, %p138
      %p140 = scmp.le.s32.totalorder 1, %s12
      %p141 = scmp.lt.s32.totalorder %s12, 3
      %p142 = pnand %p140, %p141
      %p143 = pneg %p142
      // Predicated region
      $region9: #{tpu_custom_call.1} parent=5 // pred_check
        _
      $region10: #{tpu_custom_call.1} parent=5 // pred_check_branch
        %145 = sbr.rel (%p142) target = $region12
      $region11: #{tpu_custom_call.1} parent=5 // pred_region
        %s146 = ssub.s32 %s12, 1
      $region12: #{tpu_custom_call.1} parent=5 // pred_fallthru
        _
      %p147 = scmp.lt.s32.totalorder %s12, 2
      // Predicated region
      $region13: #{tpu_custom_call.1} parent=5 // pred_check
        %p148 = pneg %p147
      $region14: #{tpu_custom_call.1} parent=5 // pred_check_branch
        %150 = sbr.rel (%p148) target = $region16
      $region15: #{tpu_custom_call.1} parent=5 // pred_region
        // Predicated region
        $region17: #{tpu_custom_call.1} parent=15 // pred_check
          %p151 = pneg %p46
        $region18: #{tpu_custom_call.1} parent=15 // pred_check_branch
          %153 = sbr.rel (%p151) target = $region20
        $region19: #{tpu_custom_call.1} parent=15 // pred_region
          %p154 = scmp.lt.s32.totalorder %s19, 1
          %s155 = scalar_select %p154, %s19, 1
          %p156 = scmp.lt.s32.totalorder %s20, 0
          %s157 = scalar_select %p156, %s20, 0
          %s158 = smul.addr %s157, 2
          %s159 = smul.addr %s155, 2
          %s160 = sadd.s32 %s158, %s159
          %s161 = smul.addr %s160, 4
          %s162 = scalar_lea.vmem %s0, %s161
        $region20: #{tpu_custom_call.1} parent=15 // pred_fallthru
          _
        // Predicated region
        $region21: #{tpu_custom_call.1} parent=15 // pred_check
          %p163 = pneg %p72
        $region22: #{tpu_custom_call.1} parent=15 // pred_check_branch
          %165 = sbr.rel (%p163) target = $region24
        $region23: #{tpu_custom_call.1} parent=15 // pred_region
          %p166 = scmp.lt.s32.totalorder %s19, 1
          %s167 = scalar_select %p166, %s19, 1
          %s168 = smul.addr %s167, 32
          %s169 = smul.addr %s168, 8
          %s170 = scalar_lea.vmem %s1, %s169
        $region24: #{tpu_custom_call.1} parent=15 // pred_fallthru
          _
        // Predicated region
        $region25: #{tpu_custom_call.1} parent=15 // pred_check
          %p171 = pneg %p98
        $region26: #{tpu_custom_call.1} parent=15 // pred_check_branch
          %173 = sbr.rel (%p171) target = $region28
        $region27: #{tpu_custom_call.1} parent=15 // pred_region
          %p174 = scmp.lt.s32.totalorder %s19, 1
          %s175 = scalar_select %p174, %s19, 1
          %s176 = scalar_lea.vmem %s2, %s175
        $region28: #{tpu_custom_call.1} parent=15 // pred_fallthru
          _
      $region16: #{tpu_custom_call.1} parent=5 // pred_fallthru
        _
      %p177 = scmp.le.s32.totalorder 1, %s12
      %p178 = scmp.lt.s32.totalorder %s12, 3
      %p179 = pnand %p177, %p178
      %p180 = pneg %p179
      // Predicated region
      $region29: #{tpu_custom_call.1} parent=5 // pred_check
        _
      $region30: #{tpu_custom_call.1} parent=5 // pred_check_branch
        %182 = sbr.rel (%p179) target = $region32
      $region31: #{tpu_custom_call.1} parent=5 // pred_region
        %s183 = ssub.s32 %s12, 1
        %p184 = scmp.lt.s32.totalorder %s21, 1
        %s185 = scalar_select %p184, %s21, 1
        %p186 = scmp.lt.s32.totalorder %s22, 0
        %s187 = scalar_select %p186, %s22, 0
        %s188 = smul.addr %s187, 2
        %s189 = smul.addr %s185, 2
        %s190 = sadd.s32 %s188, %s189
        %s191 = smul.addr %s190, 4
        %s192 = scalar_lea.vmem %s0, %s191
        %p193 = pneg %p52
        %p194 = pneg %p49
        %p195 = scmp.lt.s32.totalorder %s21, 1
        %s196 = scalar_select %p195, %s21, 1
        %s197 = smul.addr %s196, 32
        %s198 = smul.addr %s197, 8
        %s199 = scalar_lea.vmem %s1, %s198
        %p200 = pneg %p78
        %p201 = pneg %p75
        %p202 = scmp.lt.s32.totalorder %s21, 1
        %s203 = scalar_select %p202, %s21, 1
        %s204 = scalar_lea.vmem %s2, %s203
        %p205 = pneg %p104
        %p206 = pneg %p101
        %p207 = pneg %p132
        %p208 = pneg %p129
        %s209 = sand.u32 %s119, 1
        %s210 = scalar_lea.sflag [#allocation3], %s209
        %s211 = sand.u32 %s119, 1
        %s212 = smul.addr %s211, 4
        %s213 = scalar_lea.vmem [#allocation2], %s212
        %p214 = scmp.lt.s32.totalorder %s21, 1
        %s215 = scalar_select %p214, %s21, 1
        %p216 = scmp.lt.s32.totalorder %s22, 0
        %s217 = scalar_select %p216, %s22, 0
        %s218 = smul.addr %s217, 2
        %s219 = smul.addr %s215, 2
        %s220 = sadd.s32 %s218, %s219
        %s221 = smul.addr %s220, 4
        %s222 = scalar_lea.vmem %s0, %s221
        %p223 = scmp.lt.s32.totalorder %s21, 1
        %s224 = scalar_select %p223, %s21, 1
        %s225 = smul.addr %s224, 32
        %s226 = smul.addr %s225, 8
        %s227 = scalar_lea.vmem %s1, %s226
        %p228 = scmp.lt.s32.totalorder %s21, 1
        %s229 = scalar_select %p228, %s21, 1
        %s230 = scalar_lea.vmem %s2, %s229
        %v231 = vld [vmem:[%s222] sm:$0xff]
        %v232 = vld [vmem:[%s227] sm:$0xff]
        %v233 = vld [vmem:[%s227 + $0x8] sm:$0xff]
        %v234 = vld [vmem:[%s227 + $0x10] sm:$0xff]
        %v235 = vld [vmem:[%s227 + $0x18] sm:$0xff]
        %v236 = vld [vmem:[%s227 + $0x20] sm:$0xff]
        %v237 = vld [vmem:[%s227 + $0x28] sm:$0xff]
        %v238 = vld [vmem:[%s227 + $0x30] sm:$0xff]
        %v239 = vld [vmem:[%s227 + $0x38] sm:$0xff]
        %v240 = vld [vmem:[%s227 + $0x40] sm:$0xff]
        %v241 = vld [vmem:[%s227 + $0x48] sm:$0xff]
        %v242 = vld [vmem:[%s227 + $0x50] sm:$0xff]
        %v243 = vld [vmem:[%s227 + $0x58] sm:$0xff]
        %v244 = vld [vmem:[%s227 + $0x60] sm:$0xff]
        %v245 = vld [vmem:[%s227 + $0x68] sm:$0xff]
        %v246 = vld [vmem:[%s227 + $0x70] sm:$0xff]
        %v247 = vld [vmem:[%s227 + $0x78] sm:$0xff]
        %v248 = vld [vmem:[%s227 + $0x80] sm:$0xff]
        %v249 = vld [vmem:[%s227 + $0x88] sm:$0xff]
        %v250 = vld [vmem:[%s227 + $0x90] sm:$0xff]
        %v251 = vld [vmem:[%s227 + $0x98] sm:$0xff]
        %v252 = vld [vmem:[%s227 + $0xa0] sm:$0xff]
        %v253 = vld [vmem:[%s227 + $0xa8] sm:$0xff]
        %v254 = vld [vmem:[%s227 + $0xb0] sm:$0xff]
        %v255 = vld [vmem:[%s227 + $0xb8] sm:$0xff]
        %v256 = vld [vmem:[%s227 + $0xc0] sm:$0xff]
        %v257 = vld [vmem:[%s227 + $0xc8] sm:$0xff]
        %v258 = vld [vmem:[%s227 + $0xd0] sm:$0xff]
        %v259 = vld [vmem:[%s227 + $0xd8] sm:$0xff]
        %v260 = vld [vmem:[%s227 + $0xe0] sm:$0xff]
        %v261 = vld [vmem:[%s227 + $0xe8] sm:$0xff]
        %v262 = vld [vmem:[%s227 + $0xf0] sm:$0xff]
        %v263 = vld [vmem:[%s227 + $0xf8] sm:$0xff]
        %v265 = vcombine.high %v231, %v231
        %267 = vmatprep.subr.mxu0 0.0
        %268 = vmatpush1.msra.mxu0 %v247
        %269 = vmatprep.subr.mxu0 0.0
        %270 = vmatpush1.msra.mxu0 %v246
        %271 = vmatprep.subr.mxu0 0.0
        %272 = vmatpush1.msra.mxu0 %v245
        %273 = vmatprep.subr.mxu0 0.0
        %274 = vmatpush1.msra.mxu0 %v244
        %275 = vmatprep.subr.mxu0 0.0
        %276 = vmatpush1.msra.mxu0 %v243
        %277 = vmatprep.subr.mxu0 0.0
        %278 = vmatpush1.msra.mxu0 %v242
        %279 = vmatprep.subr.mxu0 0.0
        %280 = vmatpush1.msra.mxu0 %v241
        %281 = vmatprep.subr.mxu0 0.0
        %282 = vmatpush1.msra.mxu0 %v240
        %283 = vmatprep.subr.mxu0 0.0
        %284 = vmatpush1.msra.mxu0 %v239
        %285 = vmatprep.subr.mxu0 0.0
        %286 = vmatpush1.msra.mxu0 %v238
        %287 = vmatprep.subr.mxu0 0.0
        %288 = vmatpush1.msra.mxu0 %v237
        %289 = vmatprep.subr.mxu0 0.0
        %290 = vmatpush1.msra.mxu0 %v236
        %291 = vmatprep.subr.mxu0 0.0
        %292 = vmatpush1.msra.mxu0 %v235
        %293 = vmatprep.subr.mxu0 0.0
        %294 = vmatpush1.msra.mxu0 %v234
        %295 = vmatprep.subr.mxu0 0.0
        %296 = vmatpush1.msra.mxu0 %v233
        %297 = vmatprep.subr.mxu0 0.0
        %298 = vmatpush1.msra.mxu0 %v232
        %299 = vmatprep.subr.mxu0 0.0
        %300 = vmatpush2.msra.mxu0 %v263
        %301 = vmatprep.subr.mxu0 0.0
        %302 = vmatpush2.msra.mxu0 %v262
        %303 = vmatprep.subr.mxu0 0.0
        %304 = vmatpush2.msra.mxu0 %v261
        %305 = vmatprep.subr.mxu0 0.0
        %306 = vmatpush2.msra.mxu0 %v260
        %307 = vmatprep.subr.mxu0 0.0
        %308 = vmatpush2.msra.mxu0 %v259
        %309 = vmatprep.subr.mxu0 0.0
        %310 = vmatpush2.msra.mxu0 %v258
        %311 = vmatprep.subr.mxu0 0.0
        %312 = vmatpush2.msra.mxu0 %v257
        %313 = vmatprep.subr.mxu0 0.0
        %314 = vmatpush2.msra.mxu0 %v256
        %315 = vmatprep.subr.mxu0 0.0
        %316 = vmatpush2.msra.mxu0 %v255
        %317 = vmatprep.subr.mxu0 0.0
        %318 = vmatpush2.msra.mxu0 %v254
        %319 = vmatprep.subr.mxu0 0.0
        %320 = vmatpush2.msra.mxu0 %v253
        %321 = vmatprep.subr.mxu0 0.0
        %322 = vmatpush2.msra.mxu0 %v252
        %323 = vmatprep.subr.mxu0 0.0
        %324 = vmatpush2.msra.mxu0 %v251
        %325 = vmatprep.subr.mxu0 0.0
        %326 = vmatpush2.msra.mxu0 %v250
        %327 = vmatprep.subr.mxu0 0.0
        %328 = vmatpush2.msra.mxu0 %v249
        %329 = vmatprep.subr.mxu0 0.0
        %330 = vmatpush2.msra.mxu0 %v248
        %331 = vmatprep.mubr.f32.mxu0 %v265
        %332 = vmatmul.mubr.f32.gmra.mxu0 %v231
        %v333 = vpop.f32.mrf.mxu0
        %v334 = vadd.f32 0.0, %v333
        %v335 = vpop.f32.mrf.mxu0
        %336 = vdwg.mxu0
        %v337 = vld [vmem:[%s230] sm:$0x1]
        %v339 = vlaneseq
        %v340 = vshrl.u32 %v339, 7
        %v341 = vsub.s32 0, %v340
        %v342 = vrot.slane %v337, %v341
        %v344 = vmul.f32 %v334, %v342
        %vm345 = vcmask 125952
        %346 = vst.msk [vmem:[%s213] sm:$0xf] %vm345, %v344
        %s347 = sand.u32 %s119, 1
        %s348 = scalar_lea.sflag [#allocation3], %s347
        %s349 = sand.u32 %s119, 1
        %s350 = smul.addr %s349, 4
        %s351 = scalar_lea.vmem [#allocation2], %s350
        // Predicated region
        $region33: #{tpu_custom_call.1} parent=31 // pred_check
          %p352 = pneg %p129
        $region34: #{tpu_custom_call.1} parent=31 // pred_check_branch
          %354 = sbr.rel (%p352) target = $region36
        $region35: #{tpu_custom_call.1} parent=31 // pred_region
          %s356 = ssub.s32 64, 64
          %357 = vsyncadd %s348, %s356
          %s358 = sadd.s32 %s22, %s21
          %s359 = smul.addr %s358, 64
          %s360 = scalar_lea.hbm %s3, %s359
          %s362 = sshll.u32 %s351, 4
          %s363 = int_to_ptr.vmem [resolvable:$true] %s362
          %365 = dma.vmem_to_hbm [thread:$0]  %s363, 64, %s360, %s348
        $region36: #{tpu_custom_call.1} parent=31 // pred_fallthru
          _
      $region32: #{tpu_custom_call.1} parent=5 // pred_fallthru
        _
      %p366 = scmp.le.s32.totalorder 2, %s12
      // Predicated region
      $region37: #{tpu_custom_call.1} parent=5 // pred_check
        %p367 = pneg %p366
      $region38: #{tpu_custom_call.1} parent=5 // pred_check_branch
        %369 = sbr.rel (%p367) target = $region40
      $region39: #{tpu_custom_call.1} parent=5 // pred_region
        %s370 = ssub.s32 %s12, 2
        // Predicated region
        $region41: #{tpu_custom_call.1} parent=39 // pred_check
          %p371 = pneg %p135
        $region42: #{tpu_custom_call.1} parent=39 // pred_check_branch
          %373 = sbr.rel (%p371) target = $region44
        $region43: #{tpu_custom_call.1} parent=39 // pred_region
          %s374 = sand.u32 %s120, 1
          %s375 = scalar_lea.sflag [#allocation3], %s374
          %s376 = sand.u32 %s120, 1
          %s377 = smul.addr %s376, 4
          %s378 = scalar_lea.vmem [#allocation2], %s377
          %379 = dma.done %s375, 64
        $region44: #{tpu_custom_call.1} parent=39 // pred_fallthru
          _
      $region40: #{tpu_custom_call.1} parent=5 // pred_fallthru
        _
    $region6: #{tpu_custom_call.1} parent=1 // loop_footer
      %s16 = sadd.s32 1, %s12
    $region7: #{tpu_custom_call.1} parent=1 // loop_footer_branch
      %11 = sbr.rel target = $region3
    $region8: #{tpu_custom_call.1} parent=1 // loop_exit
      _
    %380 = vsyncpa [#allocation3], 1
    %s381 = scalar_lea.sflag [#allocation3], 1
    %382 = vsyncpa %s381, 1

</llo_original>
